<compile_context>
chip_gen: v7x
topology: tpu7x:2x2x1
jax: 0.10.0
libtpu: 0.0.40
codegen_flags: <defaults>
</compile_context>

<pallas_src>
import functools

import jax
import jax.numpy as jnp
from jax.experimental import pallas as pl
from jax.experimental.pallas import tpu as pltpu

EPS = 1e-5       # nn.BatchNorm1d default eps
LANES = 128      # TPU lane width


def _pad_to(n: int, m: int) -> int:
    return ((n + m - 1) // m) * m


# ---------------------------------------------------------------------------
# Fused kernel: all layers in one body, activations stay on-chip (VMEM/vregs).
# ---------------------------------------------------------------------------
def _fused_mlp_kernel(*refs, n_hidden: int, residual_flags: tuple):
    """refs = (x_ref, w0, b0, w1, b1, ..., w_out, b_out, o_ref).

    Weights are pre-folded (bias + eval-mode BN), lane-padded and bf16;
    biases are f32 with shape (1, H_pad).
    """
    x_ref = refs[0]
    o_ref = refs[-1]
    p = refs[1:-1]

    h_bf16 = x_ref[...]            # (tm, in_pad) bf16 — MXU input
    res_f32 = None                 # f32 residual copy, only kept when consumed

    for i in range(n_hidden):
        w_ref = p[2 * i]
        b_ref = p[2 * i + 1]
        # bf16 x bf16 -> f32 accumulate on the MXU (lane-dense K and N)
        y = jnp.dot(h_bf16, w_ref[...], preferred_element_type=jnp.float32)
        y = y + b_ref[...]                       # folded (bias + BN) affine, f32
        y = jnp.maximum(y, 0.0)                  # ReLU, f32 epilogue (v5e-safe)
        if residual_flags[i]:                    # static compile-time flag
            y = y + res_f32                      # residual = this layer's input
        # Keep a single extra live copy only if the NEXT layer consumes it.
        res_f32 = y if (i + 1 < n_hidden and residual_flags[i + 1]) else None
        h_bf16 = y.astype(jnp.bfloat16)          # feed next matmul in bf16

    w_out_ref = p[2 * n_hidden]
    b_out_ref = p[2 * n_hidden + 1]
    out = jnp.dot(h_bf16, w_out_ref[...], preferred_element_type=jnp.float32)
    o_ref[...] = out + b_out_ref[...]            # lane-dense (tm, out_cols) store


# ---------------------------------------------------------------------------
# BN folding (eval mode): y = x @ w' + b'
# ---------------------------------------------------------------------------
def _fold_bn(w, b, gamma, beta, mean, var):
    # Default running_var init is 1.0; if running_var can be tiny, fold the
    # scale into the f32 epilogue instead to avoid bf16 blow-up of w*inv_std.
    inv_std = gamma * jax.lax.rsqrt(var + EPS)         # (1, H)
    w_f = w * inv_std                                  # scale columns
    b_f = (b - mean) * inv_std + beta
    return w_f, b_f


# ---------------------------------------------------------------------------
# Wrapper: fold BN, lane-pad everything, single pallas_call.
# ---------------------------------------------------------------------------
def _mlp_forward_impl(x, params, *, use_residual: bool, single_buffer_weights: bool):
    batch, in_dim = x.shape
    in_pad = _pad_to(in_dim, LANES)

    # ---- fold BN, zero-pad K/N to lane multiples, cast weights to bf16 -----
    hidden = []
    residual_flags = []
    prev_orig, prev_pad = in_dim, in_pad
    for i, (w, b, g, be, m, v) in enumerate(params["hidden"]):
        out_orig = w.shape[1]
        out_pad = _pad_to(out_orig, LANES)
        w_f, b_f = _fold_bn(w, b, g, be, m, v)
        w_p = jnp.pad(w_f, ((0, prev_pad - prev_orig), (0, out_pad - out_orig)))
        b_p = jnp.pad(b_f, ((0, 0), (0, out_pad - out_orig)))
        hidden.append((w_p.astype(jnp.bfloat16), b_p.astype(jnp.float32)))
        # Residual decision uses ORIGINAL dims (matches PyTorch semantics);
        # padded columns are zero on both operands so the add stays correct.
        residual_flags.append(bool(use_residual and i > 0 and prev_orig == out_orig))
        prev_orig, prev_pad = out_orig, out_pad

    w_out, b_out = params["out"]
    n_classes = w_out.shape[1]
    out_cols = _pad_to(n_classes, LANES)
    w_out_p = jnp.pad(
        w_out, ((0, prev_pad - prev_orig), (0, out_cols - n_classes))
    ).astype(jnp.bfloat16)
    b_out_p = jnp.pad(b_out, ((0, 0), (0, out_cols - n_classes))).astype(jnp.float32)

    # ---- batch tiling: bf16 wants 16-row multiples; give >=2 programs when --
    # ---- possible so both v7x TensorCores get a tile.                      --
    # TODO(synk): per-chip tuning (v6e: tm up to 512, v5e: tm=128) not wired in.
    if batch <= 16:
        tm = 16
    elif batch <= 512:
        tm = _pad_to(-(-batch // 2), 16)          # ceil(batch/2) -> 2 programs
    else:
        tm = 256
    pb = _pad_to(batch, tm)
    grid = (pb // tm,)

    # TODO(synk): for very large batch, fuse this pad+cast into the producer
    # instead of materializing an extra HBM copy of x.
    x_p = jnp.pad(x, ((0, pb - batch), (0, in_pad - in_dim))).astype(jnp.bfloat16)

    # ---- specs: weights use constant index_maps (VMEM-resident) and, when  --
    # ---- supported, single buffering (no pointless double-buffer).         --
    weight_kwargs = (
        {"pipeline_mode": pl.Buffered(1)} if single_buffer_weights else {}
    )
    flat_args = [x_p]
    in_specs = [pl.BlockSpec((tm, in_pad), lambda i: (i, 0))]
    for (w, b) in hidden:
        flat_args += [w, b]
        in_specs += [pl.BlockSpec(w.shape, lambda i: (0, 0), **weight_kwargs),
                     pl.BlockSpec(b.shape, lambda i: (0, 0), **weight_kwargs)]
    flat_args += [w_out_p, b_out_p]
    in_specs += [pl.BlockSpec(w_out_p.shape, lambda i: (0, 0), **weight_kwargs),
                 pl.BlockSpec(b_out_p.shape, lambda i: (0, 0), **weight_kwargs)]

    # ---- VMEM budget (single-buffered weights + double-buffered x/out) -----
    weight_bytes = int(w_out_p.size) * 2 + int(b_out_p.size) * 4
    for (w, b) in hidden:
        weight_bytes += int(w.size) * 2 + int(b.size) * 4
    max_h = max([w.shape[1] for (w, _) in hidden] + [out_cols, in_pad])
    vmem_needed = (
        weight_bytes * (1 if single_buffer_weights else 2)
        + 2 * tm * in_pad * 2          # double-buffered bf16 input tile
        + 2 * tm * out_cols * 4        # double-buffered f32 output tile
        + 3 * tm * max_h * 4           # live f32 activation / residual headroom
    )
    # TODO(synk): if weights alone exceed ~40 MiB, split the widest layer's N
    # (or add a K-reduction grid axis) instead of one fully-resident kernel.
    vmem_limit = min(max(32 * 1024 * 1024, int(vmem_needed * 1.25)),
                     96 * 1024 * 1024)

    # ---- cost estimate: helps XLA overlap wrapper pads/casts with the call --
    flops = 0
    k = in_pad
    for (w, _) in hidden:
        flops += 2 * pb * k * w.shape[1]
        k = w.shape[1]
    flops += 2 * pb * k * out_cols
    bytes_accessed = weight_bytes + int(x_p.size) * 2 + pb * out_cols * 4
    cost = pl.CostEstimate(flops=flops, transcendentals=0,
                           bytes_accessed=bytes_accessed)

    kernel = functools.partial(_fused_mlp_kernel,
                               n_hidden=len(hidden),
                               residual_flags=tuple(residual_flags))

    out = pl.pallas_call(
        kernel,
        out_shape=jax.ShapeDtypeStruct((pb, out_cols), jnp.float32),
        grid=grid,
        in_specs=in_specs,
        out_specs=pl.BlockSpec((tm, out_cols), lambda i: (i, 0)),
        compiler_params=pltpu.CompilerParams(
            dimension_semantics=("parallel",),     # shard batch tiles across TCs
            vmem_limit_bytes=vmem_limit,
        ),
        cost_estimate=cost,
    )(*flat_args)

    return out[:batch, :n_classes]


def mlp_forward(x, params, *, use_residual: bool):
    """Fused Pallas forward.

    params = {'hidden': [(w, b, gamma, beta, mean, var), ...], 'out': (w, b)}
    with weights stored pre-transposed as (in_features, out_features).
    """
    try:
        return _mlp_forward_impl(x, params, use_residual=use_residual,
                                 single_buffer_weights=True)
    except Exception:
        # Fallback for JAX builds that reject pipeline_mode=pl.Buffered(1);
        # identical semantics, default (double) weight buffering.
        return _mlp_forward_impl(x, params, use_residual=use_residual,
                                 single_buffer_weights=False)


# ---------------------------------------------------------------------------
# Deterministic parameter init (mirrors MLPNetwork._initialize_weights)
# ---------------------------------------------------------------------------
def init_params(key, input_dim, hidden_dims, n_classes):
    params = {"hidden": [], "out": None}
    prev = input_dim
    for hdim in hidden_dims:
        key, wk = jax.random.split(key)
        # kaiming_normal_, mode='fan_out', nonlinearity='relu' -> std = sqrt(2/fan_out)
        std = (2.0 / hdim) ** 0.5
        w = jax.random.normal(wk, (prev, hdim), jnp.float32) * std   # (in, out)
        b = jnp.zeros((1, hdim), jnp.float32)
        # BatchNorm1d defaults: gamma=1, beta=0, running_mean=0, running_var=1
        gamma = jnp.ones((1, hdim), jnp.float32)
        beta = jnp.zeros((1, hdim), jnp.float32)
        mean = jnp.zeros((1, hdim), jnp.float32)
        var = jnp.ones((1, hdim), jnp.float32)
        params["hidden"].append((w, b, gamma, beta, mean, var))
        prev = hdim
    key, wk = jax.random.split(key)
    # xavier_normal_: std = sqrt(2 / (fan_in + fan_out))
    std = (2.0 / (prev + n_classes)) ** 0.5
    w_out = jax.random.normal(wk, (prev, n_classes), jnp.float32) * std
    b_out = jnp.zeros((1, n_classes), jnp.float32)
    params["out"] = (w_out, b_out)
    return params


# ---------------------------------------------------------------------------
# Pure-JAX f32 reference (for correctness check)
# ---------------------------------------------------------------------------
def mlp_forward_ref(x, params, *, use_residual: bool):
    h = x
    for i, (w, b, g, be, m, v) in enumerate(params["hidden"]):
        out_dim = w.shape[1]
        residual = h if (use_residual and i > 0 and h.shape[1] == out_dim) else None
        y = h @ w + b
        y = (y - m) * jax.lax.rsqrt(v + EPS) * g + be
        y = jnp.maximum(y, 0.0)
        if residual is not None:
            y = y + residual
        h = y
    w_out, b_out = params["out"]
    return h @ w_out + b_out


# ---------------------------------------------------------------------------
if __name__ == "__main__":
    batch, input_dim, hidden_dims, n_classes = 8, 32, [64, 64], 10
    use_residual = True

    key = jax.random.PRNGKey(0)
    key, xk = jax.random.split(key)
    x = jax.random.normal(xk, (batch, input_dim), jnp.float32)

    params = init_params(key, input_dim, hidden_dims, n_classes)

    out = mlp_forward(x, params, use_residual=use_residual)
    out = jax.block_until_ready(out)

    ref = mlp_forward_ref(x, params, use_residual=use_residual)
    assert out.shape == (batch, n_classes)
    # bf16 matmuls (f32 accumulate) vs f32 reference -> loosened tolerance.
    max_err = float(jnp.max(jnp.abs(out - ref)))
    assert jnp.allclose(out, ref, atol=5e-2, rtol=5e-2), \
        f"Pallas output mismatch vs reference (max abs err {max_err})"

    print("KERNEL_OK")
</pallas_src>

<mosaic_0001>
module attributes {stable_mosaic.version = 11 : i64} {
  func.func @_fused_mlp_kernel(%arg0: i32, %arg1: memref<16x128xbf16, #tpu.memory_space<vmem>>, %arg2: memref<128x128xbf16, #tpu.memory_space<vmem>>, %arg3: memref<1x128xf32, #tpu.memory_space<vmem>>, %arg4: memref<128x128xbf16, #tpu.memory_space<vmem>>, %arg5: memref<1x128xf32, #tpu.memory_space<vmem>>, %arg6: memref<128x128xbf16, #tpu.memory_space<vmem>>, %arg7: memref<1x128xf32, #tpu.memory_space<vmem>>, %arg8: memref<16x128xf32, #tpu.memory_space<vmem>>) attributes {dimension_semantics = [#tpu.dimension_semantics<parallel>], iteration_bounds = array<i64: 1>, scalar_prefetch = 0 : i64, scratch_operands = 0 : i64, tpu.core_type = #tpu.core_type<tc>, window_params = [{transform_indices = @transform_0, window_bounds = array<i64: 16, 128>}, {pipeline_mode = #tpu.pipeline_mode<synchronous>, transform_indices = @transform_1, window_bounds = array<i64: 128, 128>}, {pipeline_mode = #tpu.pipeline_mode<synchronous>, transform_indices = @transform_2, window_bounds = array<i64: 1, 128>}, {pipeline_mode = #tpu.pipeline_mode<synchronous>, transform_indices = @transform_3, window_bounds = array<i64: 128, 128>}, {pipeline_mode = #tpu.pipeline_mode<synchronous>, transform_indices = @transform_4, window_bounds = array<i64: 1, 128>}, {pipeline_mode = #tpu.pipeline_mode<synchronous>, transform_indices = @transform_5, window_bounds = array<i64: 128, 128>}, {pipeline_mode = #tpu.pipeline_mode<synchronous>, transform_indices = @transform_6, window_bounds = array<i64: 1, 128>}, {transform_indices = @transform_7, window_bounds = array<i64: 16, 128>}]} {
    %c0 = arith.constant 0 : index
    %c0_0 = arith.constant 0 : index
    %0 = vector.load %arg1[%c0, %c0_0] : memref<16x128xbf16, #tpu.memory_space<vmem>>, vector<16x128xbf16>
    %c0_1 = arith.constant 0 : index
    %c0_2 = arith.constant 0 : index
    %1 = vector.load %arg2[%c0_1, %c0_2] : memref<128x128xbf16, #tpu.memory_space<vmem>>, vector<128x128xbf16>
    %cst = arith.constant dense<0.000000e+00> : vector<16x128xf32>
    %2 = tpu.matmul %0, %1, %cst {dimension_numbers = #tpu.dot_dimension_numbers<[1], [0], [0], [1], [0, 0, 1, 1], [], []>} : vector<16x128xbf16>, vector<128x128xbf16>, vector<16x128xf32> -> vector<16x128xf32>
    %c0_3 = arith.constant 0 : index
    %c0_4 = arith.constant 0 : index
    %3 = vector.load %arg3[%c0_3, %c0_4] : memref<1x128xf32, #tpu.memory_space<vmem>>, vector<1x128xf32>
    %4 = vector.broadcast %3 : vector<1x128xf32> to vector<16x128xf32>
    %5 = arith.addf %2, %4 : vector<16x128xf32>
    %cst_5 = arith.constant 0.000000e+00 : f32
    %6 = vector.broadcast %cst_5 : f32 to vector<16x128xf32>
    %7 = arith.maximumf %5, %6 : vector<16x128xf32>
    %8 = arith.truncf %7 : vector<16x128xf32> to vector<16x128xbf16>
    %c0_6 = arith.constant 0 : index
    %c0_7 = arith.constant 0 : index
    %9 = vector.load %arg4[%c0_6, %c0_7] : memref<128x128xbf16, #tpu.memory_space<vmem>>, vector<128x128xbf16>
    %cst_8 = arith.constant dense<0.000000e+00> : vector<16x128xf32>
    %10 = tpu.matmul %8, %9, %cst_8 {dimension_numbers = #tpu.dot_dimension_numbers<[1], [0], [0], [1], [0, 0, 1, 1], [], []>} : vector<16x128xbf16>, vector<128x128xbf16>, vector<16x128xf32> -> vector<16x128xf32>
    %c0_9 = arith.constant 0 : index
    %c0_10 = arith.constant 0 : index
    %11 = vector.load %arg5[%c0_9, %c0_10] : memref<1x128xf32, #tpu.memory_space<vmem>>, vector<1x128xf32>
    %12 = vector.broadcast %11 : vector<1x128xf32> to vector<16x128xf32>
    %13 = arith.addf %10, %12 : vector<16x128xf32>
    %cst_11 = arith.constant 0.000000e+00 : f32
    %14 = vector.broadcast %cst_11 : f32 to vector<16x128xf32>
    %15 = arith.maximumf %13, %14 : vector<16x128xf32>
    %16 = arith.addf %15, %7 : vector<16x128xf32>
    %17 = arith.truncf %16 : vector<16x128xf32> to vector<16x128xbf16>
    %c0_12 = arith.constant 0 : index
    %c0_13 = arith.constant 0 : index
    %18 = vector.load %arg6[%c0_12, %c0_13] : memref<128x128xbf16, #tpu.memory_space<vmem>>, vector<128x128xbf16>
    %cst_14 = arith.constant dense<0.000000e+00> : vector<16x128xf32>
    %19 = tpu.matmul %17, %18, %cst_14 {dimension_numbers = #tpu.dot_dimension_numbers<[1], [0], [0], [1], [0, 0, 1, 1], [], []>} : vector<16x128xbf16>, vector<128x128xbf16>, vector<16x128xf32> -> vector<16x128xf32>
    %c0_15 = arith.constant 0 : index
    %c0_16 = arith.constant 0 : index
    %20 = vector.load %arg7[%c0_15, %c0_16] : memref<1x128xf32, #tpu.memory_space<vmem>>, vector<1x128xf32>
    %21 = vector.broadcast %20 : vector<1x128xf32> to vector<16x128xf32>
    %22 = arith.addf %19, %21 : vector<16x128xf32>
    %c0_17 = arith.constant 0 : index
    %c0_18 = arith.constant 0 : index
    %23 = vector.load %arg8[%c0_17, %c0_18] : memref<16x128xf32, #tpu.memory_space<vmem>>, vector<16x128xf32>
    tpu.vector_store %arg8[%c0_17, %c0_18], %22 {strides = array<i32>} : memref<16x128xf32, #tpu.memory_space<vmem>>, vector<16x128xf32>,
    return
  }
  func.func @transform_0(%arg0: i32) -> (i32, i32) {
    %c0_i32 = arith.constant 0 : i32
    %c0_i32_0 = arith.constant 0 : i32
    return %arg0, %c0_i32 : i32, i32
  }
  func.func @transform_1(%arg0: i32) -> (i32, i32) {
    %c0_i32 = arith.constant 0 : i32
    %c0_i32_0 = arith.constant 0 : i32
    %c0_i32_1 = arith.constant 0 : i32
    return %c0_i32, %c0_i32_0 : i32, i32
  }
  func.func @transform_2(%arg0: i32) -> (i32, i32) {
    %c0_i32 = arith.constant 0 : i32
    %c0_i32_0 = arith.constant 0 : i32
    %c0_i32_1 = arith.constant 0 : i32
    return %c0_i32, %c0_i32_0 : i32, i32
  }
  func.func @transform_3(%arg0: i32) -> (i32, i32) {
    %c0_i32 = arith.constant 0 : i32
    %c0_i32_0 = arith.constant 0 : i32
    %c0_i32_1 = arith.constant 0 : i32
    return %c0_i32, %c0_i32_0 : i32, i32
  }
  func.func @transform_4(%arg0: i32) -> (i32, i32) {
    %c0_i32 = arith.constant 0 : i32
    %c0_i32_0 = arith.constant 0 : i32
    %c0_i32_1 = arith.constant 0 : i32
    return %c0_i32, %c0_i32_0 : i32, i32
  }
  func.func @transform_5(%arg0: i32) -> (i32, i32) {
    %c0_i32 = arith.constant 0 : i32
    %c0_i32_0 = arith.constant 0 : i32
    %c0_i32_1 = arith.constant 0 : i32
    return %c0_i32, %c0_i32_0 : i32, i32
  }
  func.func @transform_6(%arg0: i32) -> (i32, i32) {
    %c0_i32 = arith.constant 0 : i32
    %c0_i32_0 = arith.constant 0 : i32
    %c0_i32_1 = arith.constant 0 : i32
    return %c0_i32, %c0_i32_0 : i32, i32
  }
  func.func @transform_7(%arg0: i32) -> (i32, i32) {
    %c0_i32 = arith.constant 0 : i32
    %c0_i32_0 = arith.constant 0 : i32
    return %arg0, %c0_i32 : i32, i32
  }
}

module attributes {stable_mosaic.version = 11 : i64} {
  func.func @_fused_mlp_kernel(%arg0: i32, %arg1: memref<16x128xbf16, #tpu.memory_space<vmem>>, %arg2: memref<128x128xbf16, #tpu.memory_space<vmem>>, %arg3: memref<1x128xf32, #tpu.memory_space<vmem>>, %arg4: memref<128x128xbf16, #tpu.memory_space<vmem>>, %arg5: memref<1x128xf32, #tpu.memory_space<vmem>>, %arg6: memref<128x128xbf16, #tpu.memory_space<vmem>>, %arg7: memref<1x128xf32, #tpu.memory_space<vmem>>, %arg8: memref<16x128xf32, #tpu.memory_space<vmem>>) attributes {dimension_semantics = [#tpu.dimension_semantics<parallel>], iteration_bounds = array<i64: 1>, scalar_prefetch = 0 : i64, scratch_operands = 0 : i64, tpu.core_type = #tpu.core_type<tc>, window_params = [{transform_indices = @transform_0, window_bounds = array<i64: 16, 128>}, {pipeline_mode = #tpu.pipeline_mode<synchronous>, transform_indices = @transform_1, window_bounds = array<i64: 128, 128>}, {pipeline_mode = #tpu.pipeline_mode<synchronous>, transform_indices = @transform_2, window_bounds = array<i64: 1, 128>}, {pipeline_mode = #tpu.pipeline_mode<synchronous>, transform_indices = @transform_3, window_bounds = array<i64: 128, 128>}, {pipeline_mode = #tpu.pipeline_mode<synchronous>, transform_indices = @transform_4, window_bounds = array<i64: 1, 128>}, {pipeline_mode = #tpu.pipeline_mode<synchronous>, transform_indices = @transform_5, window_bounds = array<i64: 128, 128>}, {pipeline_mode = #tpu.pipeline_mode<synchronous>, transform_indices = @transform_6, window_bounds = array<i64: 1, 128>}, {transform_indices = @transform_7, window_bounds = array<i64: 16, 128>}]} {
    %c0 = arith.constant 0 : index
    %c0_0 = arith.constant 0 : index
    %0 = vector.load %arg1[%c0, %c0_0] : memref<16x128xbf16, #tpu.memory_space<vmem>>, vector<16x128xbf16>
    %c0_1 = arith.constant 0 : index
    %c0_2 = arith.constant 0 : index
    %1 = vector.load %arg2[%c0_1, %c0_2] : memref<128x128xbf16, #tpu.memory_space<vmem>>, vector<128x128xbf16>
    %cst = arith.constant dense<0.000000e+00> : vector<16x128xf32>
    %2 = tpu.matmul %0, %1, %cst {dimension_numbers = #tpu.dot_dimension_numbers<[1], [0], [0], [1], [0, 0, 1, 1], [], []>} : vector<16x128xbf16>, vector<128x128xbf16>, vector<16x128xf32> -> vector<16x128xf32>
    %c0_3 = arith.constant 0 : index
    %c0_4 = arith.constant 0 : index
    %3 = vector.load %arg3[%c0_3, %c0_4] : memref<1x128xf32, #tpu.memory_space<vmem>>, vector<1x128xf32>
    %4 = vector.broadcast %3 : vector<1x128xf32> to vector<16x128xf32>
    %5 = arith.addf %2, %4 : vector<16x128xf32>
    %cst_5 = arith.constant 0.000000e+00 : f32
    %6 = vector.broadcast %cst_5 : f32 to vector<16x128xf32>
    %7 = arith.maximumf %5, %6 : vector<16x128xf32>
    %8 = arith.truncf %7 : vector<16x128xf32> to vector<16x128xbf16>
    %c0_6 = arith.constant 0 : index
    %c0_7 = arith.constant 0 : index
    %9 = vector.load %arg4[%c0_6, %c0_7] : memref<128x128xbf16, #tpu.memory_space<vmem>>, vector<128x128xbf16>
    %cst_8 = arith.constant dense<0.000000e+00> : vector<16x128xf32>
    %10 = tpu.matmul %8, %9, %cst_8 {dimension_numbers = #tpu.dot_dimension_numbers<[1], [0], [0], [1], [0, 0, 1, 1], [], []>} : vector<16x128xbf16>, vector<128x128xbf16>, vector<16x128xf32> -> vector<16x128xf32>
    %c0_9 = arith.constant 0 : index
    %c0_10 = arith.constant 0 : index
    %11 = vector.load %arg5[%c0_9, %c0_10] : memref<1x128xf32, #tpu.memory_space<vmem>>, vector<1x128xf32>
    %12 = vector.broadcast %11 : vector<1x128xf32> to vector<16x128xf32>
    %13 = arith.addf %10, %12 : vector<16x128xf32>
    %cst_11 = arith.constant 0.000000e+00 : f32
    %14 = vector.broadcast %cst_11 : f32 to vector<16x128xf32>
    %15 = arith.maximumf %13, %14 : vector<16x128xf32>
    %16 = arith.addf %15, %7 : vector<16x128xf32>
    %17 = arith.truncf %16 : vector<16x128xf32> to vector<16x128xbf16>
    %c0_12 = arith.constant 0 : index
    %c0_13 = arith.constant 0 : index
    %18 = vector.load %arg6[%c0_12, %c0_13] : memref<128x128xbf16, #tpu.memory_space<vmem>>, vector<128x128xbf16>
    %cst_14 = arith.constant dense<0.000000e+00> : vector<16x128xf32>
    %19 = tpu.matmul %17, %18, %cst_14 {dimension_numbers = #tpu.dot_dimension_numbers<[1], [0], [0], [1], [0, 0, 1, 1], [], []>} : vector<16x128xbf16>, vector<128x128xbf16>, vector<16x128xf32> -> vector<16x128xf32>
    %c0_15 = arith.constant 0 : index
    %c0_16 = arith.constant 0 : index
    %20 = vector.load %arg7[%c0_15, %c0_16] : memref<1x128xf32, #tpu.memory_space<vmem>>, vector<1x128xf32>
    %21 = vector.broadcast %20 : vector<1x128xf32> to vector<16x128xf32>
    %22 = arith.addf %19, %21 : vector<16x128xf32>
    %c0_17 = arith.constant 0 : index
    %c0_18 = arith.constant 0 : index
    %23 = vector.load %arg8[%c0_17, %c0_18] : memref<16x128xf32, #tpu.memory_space<vmem>>, vector<16x128xf32>
    tpu.vector_store %arg8[%c0_17, %c0_18], %22 {strides = array<i32>} : memref<16x128xf32, #tpu.memory_space<vmem>>, vector<16x128xf32>,
    return
  }
  func.func @transform_0(%arg0: i32) -> (i32, i32) {
    %c0_i32 = arith.constant 0 : i32
    %c0_i32_0 = arith.constant 0 : i32
    return %arg0, %c0_i32 : i32, i32
  }
  func.func @transform_1(%arg0: i32) -> (i32, i32) {
    %c0_i32 = arith.constant 0 : i32
    %c0_i32_0 = arith.constant 0 : i32
    %c0_i32_1 = arith.constant 0 : i32
    return %c0_i32, %c0_i32_0 : i32, i32
  }
  func.func @transform_2(%arg0: i32) -> (i32, i32) {
    %c0_i32 = arith.constant 0 : i32
    %c0_i32_0 = arith.constant 0 : i32
    %c0_i32_1 = arith.constant 0 : i32
    return %c0_i32, %c0_i32_0 : i32, i32
  }
  func.func @transform_3(%arg0: i32) -> (i32, i32) {
    %c0_i32 = arith.constant 0 : i32
    %c0_i32_0 = arith.constant 0 : i32
    %c0_i32_1 = arith.constant 0 : i32
    return %c0_i32, %c0_i32_0 : i32, i32
  }
  func.func @transform_4(%arg0: i32) -> (i32, i32) {
    %c0_i32 = arith.constant 0 : i32
    %c0_i32_0 = arith.constant 0 : i32
    %c0_i32_1 = arith.constant 0 : i32
    return %c0_i32, %c0_i32_0 : i32, i32
  }
  func.func @transform_5(%arg0: i32) -> (i32, i32) {
    %c0_i32 = arith.constant 0 : i32
    %c0_i32_0 = arith.constant 0 : i32
    %c0_i32_1 = arith.constant 0 : i32
    return %c0_i32, %c0_i32_0 : i32, i32
  }
  func.func @transform_6(%arg0: i32) -> (i32, i32) {
    %c0_i32 = arith.constant 0 : i32
    %c0_i32_0 = arith.constant 0 : i32
    %c0_i32_1 = arith.constant 0 : i32
    return %c0_i32, %c0_i32_0 : i32, i32
  }
  func.func @transform_7(%arg0: i32) -> (i32, i32) {
    %c0_i32 = arith.constant 0 : i32
    %c0_i32_0 = arith.constant 0 : i32
    return %arg0, %c0_i32 : i32, i32
  }
}

</mosaic_0001>

<llo_original>
// kernel: tpu_custom_call.1
$region0: #{tpu_custom_call.1}
  #allocation0 [shape = 'u32[]', space=smem, size = 0x4, offset = 0x4, fixed_abs, tag = 'smem constant byte address 0x4 - core index']
  #allocation1 [shape = 'u32[144,128]{1,0:T(1,128)}', space=vmem, size = 0x12000, scoped, tag = 'internal scratch']
  %s0 = inlined_call_operand.hbm [shape: bf16[16,128], index: 0, kind: input, shape index: {}]
  %s1 = inlined_call_operand.hbm [shape: bf16[128,128], index: 1, kind: input, shape index: {}]
  %s2 = inlined_call_operand.vmem [shape: f32[1,128], index: 2, kind: input, shape index: {}]
  %s3 = inlined_call_operand.hbm [shape: bf16[128,128], index: 3, kind: input, shape index: {}]
  %s4 = inlined_call_operand.vmem [shape: f32[1,128], index: 4, kind: input, shape index: {}]
  %s5 = inlined_call_operand.hbm [shape: bf16[128,128], index: 5, kind: input, shape index: {}]
  %s6 = inlined_call_operand.vmem [shape: f32[1,128], index: 6, kind: input, shape index: {}]
  %s7 = inlined_call_operand.hbm [shape: f32[16,128], index: 7, kind: output, shape index: {}]
  %s8 = sld [smem:[#allocation0]]
  $region54: #{tpu_custom_call.1} parent=0
    _
  %s10 = ssub.s32 1, %s8
  %s11 = scalar_select 0, %s10, %s8
  $region1: #{tpu_custom_call.1} parent=0
    #allocation2 [shape = 'u8[4096]{0}', space=vmem, size = 0x1000, scoped, tag = 'input window, operand 0, single buffered']
    #allocation3 [shape = 's32[1]{0}', space=sflag, size = 0x4, scoped, tag = 'scoped memory for tpu_custom_call.1']
    #allocation4 [shape = 's32[1]{0}', space=sflag, size = 0x4, scoped, tag = 'scoped memory for tpu_custom_call.1']
    #allocation5 [shape = 'u8[32768]{0}', space=vmem, size = 0x8000, scoped, tag = 'input window, operand 1, single buffered']
    #allocation6 [shape = 's32[1]{0}', space=sflag, size = 0x4, scoped, tag = 'scoped memory for tpu_custom_call.1']
    #allocation7 [shape = 'u8[32768]{0}', space=vmem, size = 0x8000, scoped, tag = 'input window, operand 3, single buffered']
    #allocation8 [shape = 'u8[32768]{0}', space=vmem, size = 0x8000, scoped, tag = 'input window, operand 5, single buffered']
    #allocation9 [shape = 's32[1]{0}', space=sflag, size = 0x4, scoped, tag = 'scoped memory for tpu_custom_call.1']
    #allocation10 [shape = 'u8[8192]{0}', space=vmem, size = 0x2000, scoped, tag = 'output window, operand 0, single buffered']
    %12 = vsyncpa [#allocation3], 0
    %13 = vsyncpa [#allocation6], 0
    %14 = vsyncpa [#allocation9], 0
    %15 = vsyncpa [#allocation4], 0
    // Predicated region
    $region2: #{tpu_custom_call.1} parent=1 // pred_check
      _
    $region3: #{tpu_custom_call.1} parent=1 // pred_check_branch
      %17 = sbr.rel (0) target = $region5
    $region4: #{tpu_custom_call.1} parent=1 // pred_region
      %s19 = ssub.s32 128, 128
      %20 = vsyncadd [#allocation3], %s19
      %s21 = sshll.u32 [#allocation2], 4
      %s22 = int_to_ptr.vmem [resolvable:$true] %s21
      %27 = dma.hbm_to_vmem [thread:$0]  %s0, 128, %s22, [#allocation3], 64, 64, 4
    $region5: #{tpu_custom_call.1} parent=1 // pred_fallthru
      _
    // Predicated region
    $region6: #{tpu_custom_call.1} parent=1 // pred_check
      _
    $region7: #{tpu_custom_call.1} parent=1 // pred_check_branch
      %29 = sbr.rel (0) target = $region9
    $region8: #{tpu_custom_call.1} parent=1 // pred_region
      %s31 = ssub.s32 1024, 1024
      %32 = vsyncadd [#allocation6], %s31
      %s33 = sshll.u32 [#allocation5], 4
      %s34 = int_to_ptr.vmem [resolvable:$true] %s33
      %39 = dma.hbm_to_vmem [thread:$0]  %s1, 1024, %s34, [#allocation6], 64, 64, 4
    $region9: #{tpu_custom_call.1} parent=1 // pred_fallthru
      _
    // Predicated region
    $region10: #{tpu_custom_call.1} parent=1 // pred_check
      _
    $region11: #{tpu_custom_call.1} parent=1 // pred_check_branch
      %41 = sbr.rel (0) target = $region13
    $region12: #{tpu_custom_call.1} parent=1 // pred_region
      _
    $region13: #{tpu_custom_call.1} parent=1 // pred_fallthru
      _
    // Predicated region
    $region14: #{tpu_custom_call.1} parent=1 // pred_check
      _
    $region15: #{tpu_custom_call.1} parent=1 // pred_check_branch
      %43 = sbr.rel (0) target = $region17
    $region16: #{tpu_custom_call.1} parent=1 // pred_region
      %s45 = ssub.s32 1024, 1024
      %46 = vsyncadd [#allocation6], %s45
      %s47 = sshll.u32 [#allocation7], 4
      %s48 = int_to_ptr.vmem [resolvable:$true] %s47
      %53 = dma.hbm_to_vmem [thread:$0]  %s3, 1024, %s48, [#allocation6], 64, 64, 4
    $region17: #{tpu_custom_call.1} parent=1 // pred_fallthru
      _
    // Predicated region
    $region18: #{tpu_custom_call.1} parent=1 // pred_check
      _
    $region19: #{tpu_custom_call.1} parent=1 // pred_check_branch
      %55 = sbr.rel (0) target = $region21
    $region20: #{tpu_custom_call.1} parent=1 // pred_region
      _
    $region21: #{tpu_custom_call.1} parent=1 // pred_fallthru
      _
    // Predicated region
    $region22: #{tpu_custom_call.1} parent=1 // pred_check
      _
    $region23: #{tpu_custom_call.1} parent=1 // pred_check_branch
      %57 = sbr.rel (0) target = $region25
    $region24: #{tpu_custom_call.1} parent=1 // pred_region
      %s59 = ssub.s32 1024, 1024
      %60 = vsyncadd [#allocation9], %s59
      %s61 = sshll.u32 [#allocation8], 4
      %s62 = int_to_ptr.vmem [resolvable:$true] %s61
      %67 = dma.hbm_to_vmem [thread:$0]  %s5, 1024, %s62, [#allocation9], 64, 64, 4
    $region25: #{tpu_custom_call.1} parent=1 // pred_fallthru
      _
    // Predicated region
    $region26: #{tpu_custom_call.1} parent=1 // pred_check
      _
    $region27: #{tpu_custom_call.1} parent=1 // pred_check_branch
      %69 = sbr.rel (0) target = $region29
    $region28: #{tpu_custom_call.1} parent=1 // pred_region
      _
    $region29: #{tpu_custom_call.1} parent=1 // pred_fallthru
      _
    // Predicated region
    $region30: #{tpu_custom_call.1} parent=1 // pred_check
      _
    $region31: #{tpu_custom_call.1} parent=1 // pred_check_branch
      %71 = sbr.rel (0) target = $region33
    $region32: #{tpu_custom_call.1} parent=1 // pred_region
      %72 = dma.done [#allocation3], 128
    $region33: #{tpu_custom_call.1} parent=1 // pred_fallthru
      _
    // Predicated region
    $region34: #{tpu_custom_call.1} parent=1 // pred_check
      _
    $region35: #{tpu_custom_call.1} parent=1 // pred_check_branch
      %74 = sbr.rel (0) target = $region37
    $region36: #{tpu_custom_call.1} parent=1 // pred_region
      %75 = dma.done [#allocation6], 1024
    $region37: #{tpu_custom_call.1} parent=1 // pred_fallthru
      _
    // Predicated region
    $region38: #{tpu_custom_call.1} parent=1 // pred_check
      _
    $region39: #{tpu_custom_call.1} parent=1 // pred_check_branch
      %77 = sbr.rel (0) target = $region41
    $region40: #{tpu_custom_call.1} parent=1 // pred_region
      %78 = dma.done [#allocation6], 1024
    $region41: #{tpu_custom_call.1} parent=1 // pred_fallthru
      _
    // Predicated region
    $region42: #{tpu_custom_call.1} parent=1 // pred_check
      _
    $region43: #{tpu_custom_call.1} parent=1 // pred_check_branch
      %80 = sbr.rel (0) target = $region45
    $region44: #{tpu_custom_call.1} parent=1 // pred_region
      %81 = dma.done [#allocation9], 1024
    $region45: #{tpu_custom_call.1} parent=1 // pred_fallthru
      _
    %v83 = vld [vmem:[#allocation2] sm:$0xf]
    %v84 = vld [vmem:[#allocation2 + $0x4] sm:$0xf]
    %v85 = vld [vmem:[#allocation5] sm:$0xf]
    %v86 = vld [vmem:[#allocation5 + $0x4] sm:$0xf]
    %v87 = vld [vmem:[#allocation5 + $0x8] sm:$0xf]
    %v88 = vld [vmem:[#allocation5 + $0xc] sm:$0xf]
    %v89 = vld [vmem:[#allocation5 + $0x10] sm:$0xf]
    %v90 = vld [vmem:[#allocation5 + $0x14] sm:$0xf]
    %v91 = vld [vmem:[#allocation5 + $0x18] sm:$0xf]
    %v92 = vld [vmem:[#allocation5 + $0x1c] sm:$0xf]
    %v93 = vld [vmem:[#allocation5 + $0x20] sm:$0xf]
    %v94 = vld [vmem:[#allocation5 + $0x24] sm:$0xf]
    %v95 = vld [vmem:[#allocation5 + $0x28] sm:$0xf]
    %v96 = vld [vmem:[#allocation5 + $0x2c] sm:$0xf]
    %v97 = vld [vmem:[#allocation5 + $0x30] sm:$0xf]
    %v98 = vld [vmem:[#allocation5 + $0x34] sm:$0xf]
    %v99 = vld [vmem:[#allocation5 + $0x38] sm:$0xf]
    %v100 = vld [vmem:[#allocation5 + $0x3c] sm:$0xf]
    %v101 = vld [vmem:[%s2] sm:$0x1]
    %v103 = vlaneseq
    %v104 = vshrl.u32 %v103, 7
    %v105 = vsub.s32 0, %v104
    %v106 = vrot.slane %v101, %v105
    %v110 = vunpack.c.l.b16 %v83
    %v111 = vunpack.c.l.b16 %v84
    %v112 = vpack.c.b16 %v111, %v110
    %v130 = vunpack.c.l.b16 %v85
    %v131 = vunpack.c.l.b16 %v86
    %v132 = vunpack.c.l.b16 %v87
    %v133 = vunpack.c.l.b16 %v88
    %v134 = vunpack.c.l.b16 %v89
    %v135 = vunpack.c.l.b16 %v90
    %v136 = vunpack.c.l.b16 %v91
    %v137 = vunpack.c.l.b16 %v92
    %v138 = vunpack.c.l.b16 %v93
    %v139 = vunpack.c.l.b16 %v94
    %v140 = vunpack.c.l.b16 %v95
    %v141 = vunpack.c.l.b16 %v96
    %v142 = vunpack.c.l.b16 %v97
    %v143 = vunpack.c.l.b16 %v98
    %v144 = vunpack.c.l.b16 %v99
    %v145 = vunpack.c.l.b16 %v100
    %v146 = vpack.c.b16 %v131, %v130
    %v147 = vpack.c.b16 %v133, %v132
    %v148 = vpack.c.b16 %v135, %v134
    %v149 = vpack.c.b16 %v137, %v136
    %v150 = vpack.c.b16 %v139, %v138
    %v151 = vpack.c.b16 %v141, %v140
    %v152 = vpack.c.b16 %v143, %v142
    %v153 = vpack.c.b16 %v145, %v144
    %162 = vmatprep.subr.bf16.mxu0 0
    %163 = vmatpush1.bf16.msra.mxu0 %v146
    %164 = vmatprep.subr.bf16.mxu0 0
    %165 = vmatpush1.bf16.msra.mxu0 %v147
    %166 = vmatprep.subr.bf16.mxu0 0
    %167 = vmatpush1.bf16.msra.mxu0 %v148
    %168 = vmatprep.subr.bf16.mxu0 0
    %169 = vmatpush1.bf16.msra.mxu0 %v149
    %170 = vmatprep.subr.bf16.mxu0 0
    %171 = vmatpush1.bf16.msra.mxu0 %v150
    %172 = vmatprep.subr.bf16.mxu0 0
    %173 = vmatpush1.bf16.msra.mxu0 %v151
    %174 = vmatprep.subr.bf16.mxu0 0
    %175 = vmatpush1.bf16.msra.mxu0 %v152
    %176 = vmatprep.subr.bf16.mxu0 0
    %177 = vmatpush1.bf16.msra.mxu0 %v153
    %178 = vmatprep.subr.bf16.mxu0 0
    %179 = vmatpush1.bf16.msra.mxu0 0
    %180 = vmatprep.subr.bf16.mxu0 0
    %181 = vmatpush1.bf16.msra.mxu0 0
    %182 = vmatprep.subr.bf16.mxu0 0
    %183 = vmatpush1.bf16.msra.mxu0 0
    %184 = vmatprep.subr.bf16.mxu0 0
    %185 = vmatpush1.bf16.msra.mxu0 0
    %186 = vmatprep.subr.bf16.mxu0 0
    %187 = vmatpush1.bf16.msra.mxu0 0
    %188 = vmatprep.subr.bf16.mxu0 0
    %189 = vmatpush1.bf16.msra.mxu0 0
    %190 = vmatprep.subr.bf16.mxu0 0
    %191 = vmatpush1.bf16.msra.mxu0 0
    %192 = vmatprep.subr.bf16.mxu0 0
    %193 = vmatpush1.bf16.msra.mxu0 0
    %194 = vmatprep.mubr.bf16.mxu0 0
    %195 = vmatmul.mubr.bf16.gmra.mrb[0].mxu0 %v112
    %v196 = vpop.f32.mrb[0].mxu0
    %v197 = vadd.f32 %v106, %v196
    %v198 = vpop.f32.mrb[0].mxu0
    %v199 = vpop.f32.mrb[0].mxu0
    %v200 = vadd.f32 %v106, %v199
    %v201 = vpop.f32.mrb[0].mxu0
    %202 = vdwg.mxu0
    %v203 = vmax.f32 %v197, 0.0
    %v204 = vmax.f32 %v200, 0.0
    %v205 = vpack.c.bf16 %v204, %v203
    %v206 = vld [vmem:[#allocation7] sm:$0xf]
    %v207 = vld [vmem:[#allocation7 + $0x4] sm:$0xf]
    %v208 = vld [vmem:[#allocation7 + $0x8] sm:$0xf]
    %v209 = vld [vmem:[#allocation7 + $0xc] sm:$0xf]
    %v210 = vld [vmem:[#allocation7 + $0x10] sm:$0xf]
    %v211 = vld [vmem:[#allocation7 + $0x14] sm:$0xf]
    %v212 = vld [vmem:[#allocation7 + $0x18] sm:$0xf]
    %v213 = vld [vmem:[#allocation7 + $0x1c] sm:$0xf]
    %v214 = vld [vmem:[#allocation7 + $0x20] sm:$0xf]
    %v215 = vld [vmem:[#allocation7 + $0x24] sm:$0xf]
    %v216 = vld [vmem:[#allocation7 + $0x28] sm:$0xf]
    %v217 = vld [vmem:[#allocation7 + $0x2c] sm:$0xf]
    %v218 = vld [vmem:[#allocation7 + $0x30] sm:$0xf]
    %v219 = vld [vmem:[#allocation7 + $0x34] sm:$0xf]
    %v220 = vld [vmem:[#allocation7 + $0x38] sm:$0xf]
    %v221 = vld [vmem:[#allocation7 + $0x3c] sm:$0xf]
    %v222 = vld [vmem:[%s4] sm:$0x1]
    %v224 = vlaneseq
    %v225 = vshrl.u32 %v224, 7
    %v226 = vsub.s32 0, %v225
    %v227 = vrot.slane %v222, %v226
    %v245 = vunpack.c.l.b16 %v206
    %v246 = vunpack.c.l.b16 %v207
    %v247 = vunpack.c.l.b16 %v208
    %v248 = vunpack.c.l.b16 %v209
    %v249 = vunpack.c.l.b16 %v210
    %v250 = vunpack.c.l.b16 %v211
    %v251 = vunpack.c.l.b16 %v212
    %v252 = vunpack.c.l.b16 %v213
    %v253 = vunpack.c.l.b16 %v214
    %v254 = vunpack.c.l.b16 %v215
    %v255 = vunpack.c.l.b16 %v216
    %v256 = vunpack.c.l.b16 %v217
    %v257 = vunpack.c.l.b16 %v218
    %v258 = vunpack.c.l.b16 %v219
    %v259 = vunpack.c.l.b16 %v220
    %v260 = vunpack.c.l.b16 %v221
    %v261 = vpack.c.b16 %v246, %v245
    %v262 = vpack.c.b16 %v248, %v247
    %v263 = vpack.c.b16 %v250, %v249
    %v264 = vpack.c.b16 %v252, %v251
    %v265 = vpack.c.b16 %v254, %v253
    %v266 = vpack.c.b16 %v256, %v255
    %v267 = vpack.c.b16 %v258, %v257
    %v268 = vpack.c.b16 %v260, %v259
    %277 = vmatprep.subr.bf16.mxu0 0
    %278 = vmatpush1.bf16.msra.mxu0 %v261
    %279 = vmatprep.subr.bf16.mxu0 0
    %280 = vmatpush1.bf16.msra.mxu0 %v262
    %281 = vmatprep.subr.bf16.mxu0 0
    %282 = vmatpush1.bf16.msra.mxu0 %v263
    %283 = vmatprep.subr.bf16.mxu0 0
    %284 = vmatpush1.bf16.msra.mxu0 %v264
    %285 = vmatprep.subr.bf16.mxu0 0
    %286 = vmatpush1.bf16.msra.mxu0 %v265
    %287 = vmatprep.subr.bf16.mxu0 0
    %288 = vmatpush1.bf16.msra.mxu0 %v266
    %289 = vmatprep.subr.bf16.mxu0 0
    %290 = vmatpush1.bf16.msra.mxu0 %v267
    %291 = vmatprep.subr.bf16.mxu0 0
    %292 = vmatpush1.bf16.msra.mxu0 %v268
    %293 = vmatprep.subr.bf16.mxu0 0
    %294 = vmatpush1.bf16.msra.mxu0 0
    %295 = vmatprep.subr.bf16.mxu0 0
    %296 = vmatpush1.bf16.msra.mxu0 0
    %297 = vmatprep.subr.bf16.mxu0 0
    %298 = vmatpush1.bf16.msra.mxu0 0
    %299 = vmatprep.subr.bf16.mxu0 0
    %300 = vmatpush1.bf16.msra.mxu0 0
    %301 = vmatprep.subr.bf16.mxu0 0
    %302 = vmatpush1.bf16.msra.mxu0 0
    %303 = vmatprep.subr.bf16.mxu0 0
    %304 = vmatpush1.bf16.msra.mxu0 0
    %305 = vmatprep.subr.bf16.mxu0 0
    %306 = vmatpush1.bf16.msra.mxu0 0
    %307 = vmatprep.subr.bf16.mxu0 0
    %308 = vmatpush1.bf16.msra.mxu0 0
    %309 = vmatprep.mubr.bf16.mxu0 0
    %310 = vmatmul.mubr.bf16.gmra.mrb[0].mxu0 %v205
    %v311 = vpop.f32.mrb[0].mxu0
    %v312 = vadd.f32 %v227, %v311
    %v313 = vpop.f32.mrb[0].mxu0
    %v314 = vpop.f32.mrb[0].mxu0
    %v315 = vadd.f32 %v227, %v314
    %v316 = vpop.f32.mrb[0].mxu0
    %317 = vdwg.mxu0
    %v318 = vmax.f32 %v312, 0.0
    %v319 = vmax.f32 %v315, 0.0
    %v320 = vadd.f32 %v318, %v203
    %v321 = vadd.f32 %v319, %v204
    %v322 = vpack.c.bf16 %v321, %v320
    %v323 = vld [vmem:[#allocation8] sm:$0xf]
    %v324 = vld [vmem:[#allocation8 + $0x4] sm:$0xf]
    %v325 = vld [vmem:[#allocation8 + $0x8] sm:$0xf]
    %v326 = vld [vmem:[#allocation8 + $0xc] sm:$0xf]
    %v327 = vld [vmem:[#allocation8 + $0x10] sm:$0xf]
    %v328 = vld [vmem:[#allocation8 + $0x14] sm:$0xf]
    %v329 = vld [vmem:[#allocation8 + $0x18] sm:$0xf]
    %v330 = vld [vmem:[#allocation8 + $0x1c] sm:$0xf]
    %v331 = vld [vmem:[#allocation8 + $0x20] sm:$0xf]
    %v332 = vld [vmem:[#allocation8 + $0x24] sm:$0xf]
    %v333 = vld [vmem:[#allocation8 + $0x28] sm:$0xf]
    %v334 = vld [vmem:[#allocation8 + $0x2c] sm:$0xf]
    %v335 = vld [vmem:[#allocation8 + $0x30] sm:$0xf]
    %v336 = vld [vmem:[#allocation8 + $0x34] sm:$0xf]
    %v337 = vld [vmem:[#allocation8 + $0x38] sm:$0xf]
    %v338 = vld [vmem:[#allocation8 + $0x3c] sm:$0xf]
    %v339 = vld [vmem:[%s6] sm:$0x1]
    %v341 = vlaneseq
    %v342 = vshrl.u32 %v341, 7
    %v343 = vsub.s32 0, %v342
    %v344 = vrot.slane %v339, %v343
    %v362 = vunpack.c.l.b16 %v323
    %v363 = vunpack.c.l.b16 %v324
    %v364 = vunpack.c.l.b16 %v325
    %v365 = vunpack.c.l.b16 %v326
    %v366 = vunpack.c.l.b16 %v327
    %v367 = vunpack.c.l.b16 %v328
    %v368 = vunpack.c.l.b16 %v329
    %v369 = vunpack.c.l.b16 %v330
    %v370 = vunpack.c.l.b16 %v331
    %v371 = vunpack.c.l.b16 %v332
    %v372 = vunpack.c.l.b16 %v333
    %v373 = vunpack.c.l.b16 %v334
    %v374 = vunpack.c.l.b16 %v335
    %v375 = vunpack.c.l.b16 %v336
    %v376 = vunpack.c.l.b16 %v337
    %v377 = vunpack.c.l.b16 %v338
    %v378 = vpack.c.b16 %v363, %v362
    %v379 = vpack.c.b16 %v365, %v364
    %v380 = vpack.c.b16 %v367, %v366
    %v381 = vpack.c.b16 %v369, %v368
    %v382 = vpack.c.b16 %v371, %v370
    %v383 = vpack.c.b16 %v373, %v372
    %v384 = vpack.c.b16 %v375, %v374
    %v385 = vpack.c.b16 %v377, %v376
    %394 = vmatprep.subr.bf16.mxu0 0
    %395 = vmatpush1.bf16.msra.mxu0 %v378
    %396 = vmatprep.subr.bf16.mxu0 0
    %397 = vmatpush1.bf16.msra.mxu0 %v379
    %398 = vmatprep.subr.bf16.mxu0 0
    %399 = vmatpush1.bf16.msra.mxu0 %v380
    %400 = vmatprep.subr.bf16.mxu0 0
    %401 = vmatpush1.bf16.msra.mxu0 %v381
    %402 = vmatprep.subr.bf16.mxu0 0
    %403 = vmatpush1.bf16.msra.mxu0 %v382
    %404 = vmatprep.subr.bf16.mxu0 0
    %405 = vmatpush1.bf16.msra.mxu0 %v383
    %406 = vmatprep.subr.bf16.mxu0 0
    %407 = vmatpush1.bf16.msra.mxu0 %v384
    %408 = vmatprep.subr.bf16.mxu0 0
    %409 = vmatpush1.bf16.msra.mxu0 %v385
    %410 = vmatprep.subr.bf16.mxu0 0
    %411 = vmatpush1.bf16.msra.mxu0 0
    %412 = vmatprep.subr.bf16.mxu0 0
    %413 = vmatpush1.bf16.msra.mxu0 0
    %414 = vmatprep.subr.bf16.mxu0 0
    %415 = vmatpush1.bf16.msra.mxu0 0
    %416 = vmatprep.subr.bf16.mxu0 0
    %417 = vmatpush1.bf16.msra.mxu0 0
    %418 = vmatprep.subr.bf16.mxu0 0
    %419 = vmatpush1.bf16.msra.mxu0 0
    %420 = vmatprep.subr.bf16.mxu0 0
    %421 = vmatpush1.bf16.msra.mxu0 0
    %422 = vmatprep.subr.bf16.mxu0 0
    %423 = vmatpush1.bf16.msra.mxu0 0
    %424 = vmatprep.subr.bf16.mxu0 0
    %425 = vmatpush1.bf16.msra.mxu0 0
    %426 = vmatprep.mubr.bf16.mxu0 0
    %427 = vmatmul.mubr.bf16.gmra.mrb[0].mxu0 %v322
    %v428 = vpop.f32.mrb[0].mxu0
    %v429 = vadd.f32 %v344, %v428
    %v430 = vpop.f32.mrb[0].mxu0
    %v431 = vpop.f32.mrb[0].mxu0
    %v432 = vadd.f32 %v344, %v431
    %v433 = vpop.f32.mrb[0].mxu0
    %434 = vdwg.mxu0
    %435 = vst [vmem:[#allocation10] sm:$0xff] %v429
    %436 = vst [vmem:[#allocation10 + $0x8] sm:$0xff] %v432
    // Predicated region
    $region46: #{tpu_custom_call.1} parent=1 // pred_check
      _
    $region47: #{tpu_custom_call.1} parent=1 // pred_check_branch
      %438 = sbr.rel (0) target = $region49
    $region48: #{tpu_custom_call.1} parent=1 // pred_region
      %s440 = ssub.s32 256, 256
      %441 = vsyncadd [#allocation4], %s440
      %s442 = sshll.u32 [#allocation10], 4
      %s443 = int_to_ptr.vmem [resolvable:$true] %s442
      %448 = dma.vmem_to_hbm [thread:$0]  %s443, 256, %s7, [#allocation4], 128, 128, 8
    $region49: #{tpu_custom_call.1} parent=1 // pred_fallthru
      _
    // Predicated region
    $region50: #{tpu_custom_call.1} parent=1 // pred_check
      _
    $region51: #{tpu_custom_call.1} parent=1 // pred_check_branch
      %450 = sbr.rel (0) target = $region53
    $region52: #{tpu_custom_call.1} parent=1 // pred_region
      %451 = dma.done [#allocation4], 256
    $region53: #{tpu_custom_call.1} parent=1 // pred_fallthru
      _
    %452 = vsyncpa [#allocation3], 1
    %453 = vsyncpa [#allocation6], 1
    %454 = vsyncpa [#allocation9], 1
    %455 = vsyncpa [#allocation4], 1

// kernel: tpu_custom_call.1
$region0: #{tpu_custom_call.1}
  #allocation0 [shape = 'u32[]', space=smem, size = 0x4, offset = 0x4, fixed_abs, tag = 'smem constant byte address 0x4 - core index']
  #allocation1 [shape = 'u32[144,128]{1,0:T(1,128)}', space=vmem, size = 0x12000, scoped, tag = 'internal scratch']
  %s0 = inlined_call_operand.hbm [shape: bf16[16,128], index: 0, kind: input, shape index: {}]
  %s1 = inlined_call_operand.hbm [shape: bf16[128,128], index: 1, kind: input, shape index: {}]
  %s2 = inlined_call_operand.vmem [shape: f32[1,128], index: 2, kind: input, shape index: {}]
  %s3 = inlined_call_operand.hbm [shape: bf16[128,128], index: 3, kind: input, shape index: {}]
  %s4 = inlined_call_operand.vmem [shape: f32[1,128], index: 4, kind: input, shape index: {}]
  %s5 = inlined_call_operand.hbm [shape: bf16[128,128], index: 5, kind: input, shape index: {}]
  %s6 = inlined_call_operand.vmem [shape: f32[1,128], index: 6, kind: input, shape index: {}]
  %s7 = inlined_call_operand.hbm [shape: f32[16,128], index: 7, kind: output, shape index: {}]
  %s8 = sld [smem:[#allocation0]]
  $region54: #{tpu_custom_call.1} parent=0
    _
  %s10 = ssub.s32 1, %s8
  %s11 = scalar_select 0, %s10, %s8
  $region1: #{tpu_custom_call.1} parent=0
    #allocation2 [shape = 'u8[4096]{0}', space=vmem, size = 0x1000, scoped, tag = 'input window, operand 0, single buffered']
    #allocation3 [shape = 's32[1]{0}', space=sflag, size = 0x4, scoped, tag = 'scoped memory for tpu_custom_call.1']
    #allocation4 [shape = 's32[1]{0}', space=sflag, size = 0x4, scoped, tag = 'scoped memory for tpu_custom_call.1']
    #allocation5 [shape = 'u8[32768]{0}', space=vmem, size = 0x8000, scoped, tag = 'input window, operand 1, single buffered']
    #allocation6 [shape = 's32[1]{0}', space=sflag, size = 0x4, scoped, tag = 'scoped memory for tpu_custom_call.1']
    #allocation7 [shape = 'u8[32768]{0}', space=vmem, size = 0x8000, scoped, tag = 'input window, operand 3, single buffered']
    #allocation8 [shape = 'u8[32768]{0}', space=vmem, size = 0x8000, scoped, tag = 'input window, operand 5, single buffered']
    #allocation9 [shape = 's32[1]{0}', space=sflag, size = 0x4, scoped, tag = 'scoped memory for tpu_custom_call.1']
    #allocation10 [shape = 'u8[8192]{0}', space=vmem, size = 0x2000, scoped, tag = 'output window, operand 0, single buffered']
    %12 = vsyncpa [#allocation3], 0
    %13 = vsyncpa [#allocation6], 0
    %14 = vsyncpa [#allocation9], 0
    %15 = vsyncpa [#allocation4], 0
    // Predicated region
    $region2: #{tpu_custom_call.1} parent=1 // pred_check
      _
    $region3: #{tpu_custom_call.1} parent=1 // pred_check_branch
      %17 = sbr.rel (0) target = $region5
    $region4: #{tpu_custom_call.1} parent=1 // pred_region
      %s19 = ssub.s32 128, 128
      %20 = vsyncadd [#allocation3], %s19
      %s21 = sshll.u32 [#allocation2], 4
      %s22 = int_to_ptr.vmem [resolvable:$true] %s21
      %27 = dma.hbm_to_vmem [thread:$0]  %s0, 128, %s22, [#allocation3], 64, 64, 4
    $region5: #{tpu_custom_call.1} parent=1 // pred_fallthru
      _
    // Predicated region
    $region6: #{tpu_custom_call.1} parent=1 // pred_check
      _
    $region7: #{tpu_custom_call.1} parent=1 // pred_check_branch
      %29 = sbr.rel (0) target = $region9
    $region8: #{tpu_custom_call.1} parent=1 // pred_region
      %s31 = ssub.s32 1024, 1024
      %32 = vsyncadd [#allocation6], %s31
      %s33 = sshll.u32 [#allocation5], 4
      %s34 = int_to_ptr.vmem [resolvable:$true] %s33
      %39 = dma.hbm_to_vmem [thread:$0]  %s1, 1024, %s34, [#allocation6], 64, 64, 4
    $region9: #{tpu_custom_call.1} parent=1 // pred_fallthru
      _
    // Predicated region
    $region10: #{tpu_custom_call.1} parent=1 // pred_check
      _
    $region11: #{tpu_custom_call.1} parent=1 // pred_check_branch
      %41 = sbr.rel (0) target = $region13
    $region12: #{tpu_custom_call.1} parent=1 // pred_region
      _
    $region13: #{tpu_custom_call.1} parent=1 // pred_fallthru
      _
    // Predicated region
    $region14: #{tpu_custom_call.1} parent=1 // pred_check
      _
    $region15: #{tpu_custom_call.1} parent=1 // pred_check_branch
      %43 = sbr.rel (0) target = $region17
    $region16: #{tpu_custom_call.1} parent=1 // pred_region
      %s45 = ssub.s32 1024, 1024
      %46 = vsyncadd [#allocation6], %s45
      %s47 = sshll.u32 [#allocation7], 4
      %s48 = int_to_ptr.vmem [resolvable:$true] %s47
      %53 = dma.hbm_to_vmem [thread:$0]  %s3, 1024, %s48, [#allocation6], 64, 64, 4
    $region17: #{tpu_custom_call.1} parent=1 // pred_fallthru
      _
    // Predicated region
    $region18: #{tpu_custom_call.1} parent=1 // pred_check
      _
    $region19: #{tpu_custom_call.1} parent=1 // pred_check_branch
      %55 = sbr.rel (0) target = $region21
    $region20: #{tpu_custom_call.1} parent=1 // pred_region
      _
    $region21: #{tpu_custom_call.1} parent=1 // pred_fallthru
      _
    // Predicated region
    $region22: #{tpu_custom_call.1} parent=1 // pred_check
      _
    $region23: #{tpu_custom_call.1} parent=1 // pred_check_branch
      %57 = sbr.rel (0) target = $region25
    $region24: #{tpu_custom_call.1} parent=1 // pred_region
      %s59 = ssub.s32 1024, 1024
      %60 = vsyncadd [#allocation9], %s59
      %s61 = sshll.u32 [#allocation8], 4
      %s62 = int_to_ptr.vmem [resolvable:$true] %s61
      %67 = dma.hbm_to_vmem [thread:$0]  %s5, 1024, %s62, [#allocation9], 64, 64, 4
    $region25: #{tpu_custom_call.1} parent=1 // pred_fallthru
      _
    // Predicated region
    $region26: #{tpu_custom_call.1} parent=1 // pred_check
      _
    $region27: #{tpu_custom_call.1} parent=1 // pred_check_branch
      %69 = sbr.rel (0) target = $region29
    $region28: #{tpu_custom_call.1} parent=1 // pred_region
      _
    $region29: #{tpu_custom_call.1} parent=1 // pred_fallthru
      _
    // Predicated region
    $region30: #{tpu_custom_call.1} parent=1 // pred_check
      _
    $region31: #{tpu_custom_call.1} parent=1 // pred_check_branch
      %71 = sbr.rel (0) target = $region33
    $region32: #{tpu_custom_call.1} parent=1 // pred_region
      %72 = dma.done [#allocation3], 128
    $region33: #{tpu_custom_call.1} parent=1 // pred_fallthru
      _
    // Predicated region
    $region34: #{tpu_custom_call.1} parent=1 // pred_check
      _
    $region35: #{tpu_custom_call.1} parent=1 // pred_check_branch
      %74 = sbr.rel (0) target = $region37
    $region36: #{tpu_custom_call.1} parent=1 // pred_region
      %75 = dma.done [#allocation6], 1024
    $region37: #{tpu_custom_call.1} parent=1 // pred_fallthru
      _
    // Predicated region
    $region38: #{tpu_custom_call.1} parent=1 // pred_check
      _
    $region39: #{tpu_custom_call.1} parent=1 // pred_check_branch
      %77 = sbr.rel (0) target = $region41
    $region40: #{tpu_custom_call.1} parent=1 // pred_region
      %78 = dma.done [#allocation6], 1024
    $region41: #{tpu_custom_call.1} parent=1 // pred_fallthru
      _
    // Predicated region
    $region42: #{tpu_custom_call.1} parent=1 // pred_check
      _
    $region43: #{tpu_custom_call.1} parent=1 // pred_check_branch
      %80 = sbr.rel (0) target = $region45
    $region44: #{tpu_custom_call.1} parent=1 // pred_region
      %81 = dma.done [#allocation9], 1024
    $region45: #{tpu_custom_call.1} parent=1 // pred_fallthru
      _
    %v83 = vld [vmem:[#allocation2] sm:$0xf]
    %v84 = vld [vmem:[#allocation2 + $0x4] sm:$0xf]
    %v85 = vld [vmem:[#allocation5] sm:$0xf]
    %v86 = vld [vmem:[#allocation5 + $0x4] sm:$0xf]
    %v87 = vld [vmem:[#allocation5 + $0x8] sm:$0xf]
    %v88 = vld [vmem:[#allocation5 + $0xc] sm:$0xf]
    %v89 = vld [vmem:[#allocation5 + $0x10] sm:$0xf]
    %v90 = vld [vmem:[#allocation5 + $0x14] sm:$0xf]
    %v91 = vld [vmem:[#allocation5 + $0x18] sm:$0xf]
    %v92 = vld [vmem:[#allocation5 + $0x1c] sm:$0xf]
    %v93 = vld [vmem:[#allocation5 + $0x20] sm:$0xf]
    %v94 = vld [vmem:[#allocation5 + $0x24] sm:$0xf]
    %v95 = vld [vmem:[#allocation5 + $0x28] sm:$0xf]
    %v96 = vld [vmem:[#allocation5 + $0x2c] sm:$0xf]
    %v97 = vld [vmem:[#allocation5 + $0x30] sm:$0xf]
    %v98 = vld [vmem:[#allocation5 + $0x34] sm:$0xf]
    %v99 = vld [vmem:[#allocation5 + $0x38] sm:$0xf]
    %v100 = vld [vmem:[#allocation5 + $0x3c] sm:$0xf]
    %v101 = vld [vmem:[%s2] sm:$0x1]
    %v103 = vlaneseq
    %v104 = vshrl.u32 %v103, 7
    %v105 = vsub.s32 0, %v104
    %v106 = vrot.slane %v101, %v105
    %v110 = vunpack.c.l.b16 %v83
    %v111 = vunpack.c.l.b16 %v84
    %v112 = vpack.c.b16 %v111, %v110
    %v130 = vunpack.c.l.b16 %v85
    %v131 = vunpack.c.l.b16 %v86
    %v132 = vunpack.c.l.b16 %v87
    %v133 = vunpack.c.l.b16 %v88
    %v134 = vunpack.c.l.b16 %v89
    %v135 = vunpack.c.l.b16 %v90
    %v136 = vunpack.c.l.b16 %v91
    %v137 = vunpack.c.l.b16 %v92
    %v138 = vunpack.c.l.b16 %v93
    %v139 = vunpack.c.l.b16 %v94
    %v140 = vunpack.c.l.b16 %v95
    %v141 = vunpack.c.l.b16 %v96
    %v142 = vunpack.c.l.b16 %v97
    %v143 = vunpack.c.l.b16 %v98
    %v144 = vunpack.c.l.b16 %v99
    %v145 = vunpack.c.l.b16 %v100
    %v146 = vpack.c.b16 %v131, %v130
    %v147 = vpack.c.b16 %v133, %v132
    %v148 = vpack.c.b16 %v135, %v134
    %v149 = vpack.c.b16 %v137, %v136
    %v150 = vpack.c.b16 %v139, %v138
    %v151 = vpack.c.b16 %v141, %v140
    %v152 = vpack.c.b16 %v143, %v142
    %v153 = vpack.c.b16 %v145, %v144
    %162 = vmatprep.subr.bf16.mxu0 0
    %163 = vmatpush1.bf16.msra.mxu0 %v146
    %164 = vmatprep.subr.bf16.mxu0 0
    %165 = vmatpush1.bf16.msra.mxu0 %v147
    %166 = vmatprep.subr.bf16.mxu0 0
    %167 = vmatpush1.bf16.msra.mxu0 %v148
    %168 = vmatprep.subr.bf16.mxu0 0
    %169 = vmatpush1.bf16.msra.mxu0 %v149
    %170 = vmatprep.subr.bf16.mxu0 0
    %171 = vmatpush1.bf16.msra.mxu0 %v150
    %172 = vmatprep.subr.bf16.mxu0 0
    %173 = vmatpush1.bf16.msra.mxu0 %v151
    %174 = vmatprep.subr.bf16.mxu0 0
    %175 = vmatpush1.bf16.msra.mxu0 %v152
    %176 = vmatprep.subr.bf16.mxu0 0
    %177 = vmatpush1.bf16.msra.mxu0 %v153
    %178 = vmatprep.subr.bf16.mxu0 0
    %179 = vmatpush1.bf16.msra.mxu0 0
    %180 = vmatprep.subr.bf16.mxu0 0
    %181 = vmatpush1.bf16.msra.mxu0 0
    %182 = vmatprep.subr.bf16.mxu0 0
    %183 = vmatpush1.bf16.msra.mxu0 0
    %184 = vmatprep.subr.bf16.mxu0 0
    %185 = vmatpush1.bf16.msra.mxu0 0
    %186 = vmatprep.subr.bf16.mxu0 0
    %187 = vmatpush1.bf16.msra.mxu0 0
    %188 = vmatprep.subr.bf16.mxu0 0
    %189 = vmatpush1.bf16.msra.mxu0 0
    %190 = vmatprep.subr.bf16.mxu0 0
    %191 = vmatpush1.bf16.msra.mxu0 0
    %192 = vmatprep.subr.bf16.mxu0 0
    %193 = vmatpush1.bf16.msra.mxu0 0
    %194 = vmatprep.mubr.bf16.mxu0 0
    %195 = vmatmul.mubr.bf16.gmra.mrb[0].mxu0 %v112
    %v196 = vpop.f32.mrb[0].mxu0
    %v197 = vadd.f32 %v106, %v196
    %v198 = vpop.f32.mrb[0].mxu0
    %v199 = vpop.f32.mrb[0].mxu0
    %v200 = vadd.f32 %v106, %v199
    %v201 = vpop.f32.mrb[0].mxu0
    %202 = vdwg.mxu0
    %v203 = vmax.f32 %v197, 0.0
    %v204 = vmax.f32 %v200, 0.0
    %v205 = vpack.c.bf16 %v204, %v203
    %v206 = vld [vmem:[#allocation7] sm:$0xf]
    %v207 = vld [vmem:[#allocation7 + $0x4] sm:$0xf]
    %v208 = vld [vmem:[#allocation7 + $0x8] sm:$0xf]
    %v209 = vld [vmem:[#allocation7 + $0xc] sm:$0xf]
    %v210 = vld [vmem:[#allocation7 + $0x10] sm:$0xf]
    %v211 = vld [vmem:[#allocation7 + $0x14] sm:$0xf]
    %v212 = vld [vmem:[#allocation7 + $0x18] sm:$0xf]
    %v213 = vld [vmem:[#allocation7 + $0x1c] sm:$0xf]
    %v214 = vld [vmem:[#allocation7 + $0x20] sm:$0xf]
    %v215 = vld [vmem:[#allocation7 + $0x24] sm:$0xf]
    %v216 = vld [vmem:[#allocation7 + $0x28] sm:$0xf]
    %v217 = vld [vmem:[#allocation7 + $0x2c] sm:$0xf]
    %v218 = vld [vmem:[#allocation7 + $0x30] sm:$0xf]
    %v219 = vld [vmem:[#allocation7 + $0x34] sm:$0xf]
    %v220 = vld [vmem:[#allocation7 + $0x38] sm:$0xf]
    %v221 = vld [vmem:[#allocation7 + $0x3c] sm:$0xf]
    %v222 = vld [vmem:[%s4] sm:$0x1]
    %v224 = vlaneseq
    %v225 = vshrl.u32 %v224, 7
    %v226 = vsub.s32 0, %v225
    %v227 = vrot.slane %v222, %v226
    %v245 = vunpack.c.l.b16 %v206
    %v246 = vunpack.c.l.b16 %v207
    %v247 = vunpack.c.l.b16 %v208
    %v248 = vunpack.c.l.b16 %v209
    %v249 = vunpack.c.l.b16 %v210
    %v250 = vunpack.c.l.b16 %v211
    %v251 = vunpack.c.l.b16 %v212
    %v252 = vunpack.c.l.b16 %v213
    %v253 = vunpack.c.l.b16 %v214
    %v254 = vunpack.c.l.b16 %v215
    %v255 = vunpack.c.l.b16 %v216
    %v256 = vunpack.c.l.b16 %v217
    %v257 = vunpack.c.l.b16 %v218
    %v258 = vunpack.c.l.b16 %v219
    %v259 = vunpack.c.l.b16 %v220
    %v260 = vunpack.c.l.b16 %v221
    %v261 = vpack.c.b16 %v246, %v245
    %v262 = vpack.c.b16 %v248, %v247
    %v263 = vpack.c.b16 %v250, %v249
    %v264 = vpack.c.b16 %v252, %v251
    %v265 = vpack.c.b16 %v254, %v253
    %v266 = vpack.c.b16 %v256, %v255
    %v267 = vpack.c.b16 %v258, %v257
    %v268 = vpack.c.b16 %v260, %v259
    %277 = vmatprep.subr.bf16.mxu0 0
    %278 = vmatpush1.bf16.msra.mxu0 %v261
    %279 = vmatprep.subr.bf16.mxu0 0
    %280 = vmatpush1.bf16.msra.mxu0 %v262
    %281 = vmatprep.subr.bf16.mxu0 0
    %282 = vmatpush1.bf16.msra.mxu0 %v263
    %283 = vmatprep.subr.bf16.mxu0 0
    %284 = vmatpush1.bf16.msra.mxu0 %v264
    %285 = vmatprep.subr.bf16.mxu0 0
    %286 = vmatpush1.bf16.msra.mxu0 %v265
    %287 = vmatprep.subr.bf16.mxu0 0
    %288 = vmatpush1.bf16.msra.mxu0 %v266
    %289 = vmatprep.subr.bf16.mxu0 0
    %290 = vmatpush1.bf16.msra.mxu0 %v267
    %291 = vmatprep.subr.bf16.mxu0 0
    %292 = vmatpush1.bf16.msra.mxu0 %v268
    %293 = vmatprep.subr.bf16.mxu0 0
    %294 = vmatpush1.bf16.msra.mxu0 0
    %295 = vmatprep.subr.bf16.mxu0 0
    %296 = vmatpush1.bf16.msra.mxu0 0
    %297 = vmatprep.subr.bf16.mxu0 0
    %298 = vmatpush1.bf16.msra.mxu0 0
    %299 = vmatprep.subr.bf16.mxu0 0
    %300 = vmatpush1.bf16.msra.mxu0 0
    %301 = vmatprep.subr.bf16.mxu0 0
    %302 = vmatpush1.bf16.msra.mxu0 0
    %303 = vmatprep.subr.bf16.mxu0 0
    %304 = vmatpush1.bf16.msra.mxu0 0
    %305 = vmatprep.subr.bf16.mxu0 0
    %306 = vmatpush1.bf16.msra.mxu0 0
    %307 = vmatprep.subr.bf16.mxu0 0
    %308 = vmatpush1.bf16.msra.mxu0 0
    %309 = vmatprep.mubr.bf16.mxu0 0
    %310 = vmatmul.mubr.bf16.gmra.mrb[0].mxu0 %v205
    %v311 = vpop.f32.mrb[0].mxu0
    %v312 = vadd.f32 %v227, %v311
    %v313 = vpop.f32.mrb[0].mxu0
    %v314 = vpop.f32.mrb[0].mxu0
    %v315 = vadd.f32 %v227, %v314
    %v316 = vpop.f32.mrb[0].mxu0
    %317 = vdwg.mxu0
    %v318 = vmax.f32 %v312, 0.0
    %v319 = vmax.f32 %v315, 0.0
    %v320 = vadd.f32 %v318, %v203
    %v321 = vadd.f32 %v319, %v204
    %v322 = vpack.c.bf16 %v321, %v320
    %v323 = vld [vmem:[#allocation8] sm:$0xf]
    %v324 = vld [vmem:[#allocation8 + $0x4] sm:$0xf]
    %v325 = vld [vmem:[#allocation8 + $0x8] sm:$0xf]
    %v326 = vld [vmem:[#allocation8 + $0xc] sm:$0xf]
    %v327 = vld [vmem:[#allocation8 + $0x10] sm:$0xf]
    %v328 = vld [vmem:[#allocation8 + $0x14] sm:$0xf]
    %v329 = vld [vmem:[#allocation8 + $0x18] sm:$0xf]
    %v330 = vld [vmem:[#allocation8 + $0x1c] sm:$0xf]
    %v331 = vld [vmem:[#allocation8 + $0x20] sm:$0xf]
    %v332 = vld [vmem:[#allocation8 + $0x24] sm:$0xf]
    %v333 = vld [vmem:[#allocation8 + $0x28] sm:$0xf]
    %v334 = vld [vmem:[#allocation8 + $0x2c] sm:$0xf]
    %v335 = vld [vmem:[#allocation8 + $0x30] sm:$0xf]
    %v336 = vld [vmem:[#allocation8 + $0x34] sm:$0xf]
    %v337 = vld [vmem:[#allocation8 + $0x38] sm:$0xf]
    %v338 = vld [vmem:[#allocation8 + $0x3c] sm:$0xf]
    %v339 = vld [vmem:[%s6] sm:$0x1]
    %v341 = vlaneseq
    %v342 = vshrl.u32 %v341, 7
    %v343 = vsub.s32 0, %v342
    %v344 = vrot.slane %v339, %v343
    %v362 = vunpack.c.l.b16 %v323
    %v363 = vunpack.c.l.b16 %v324
    %v364 = vunpack.c.l.b16 %v325
    %v365 = vunpack.c.l.b16 %v326
    %v366 = vunpack.c.l.b16 %v327
    %v367 = vunpack.c.l.b16 %v328
    %v368 = vunpack.c.l.b16 %v329
    %v369 = vunpack.c.l.b16 %v330
    %v370 = vunpack.c.l.b16 %v331
    %v371 = vunpack.c.l.b16 %v332
    %v372 = vunpack.c.l.b16 %v333
    %v373 = vunpack.c.l.b16 %v334
    %v374 = vunpack.c.l.b16 %v335
    %v375 = vunpack.c.l.b16 %v336
    %v376 = vunpack.c.l.b16 %v337
    %v377 = vunpack.c.l.b16 %v338
    %v378 = vpack.c.b16 %v363, %v362
    %v379 = vpack.c.b16 %v365, %v364
    %v380 = vpack.c.b16 %v367, %v366
    %v381 = vpack.c.b16 %v369, %v368
    %v382 = vpack.c.b16 %v371, %v370
    %v383 = vpack.c.b16 %v373, %v372
    %v384 = vpack.c.b16 %v375, %v374
    %v385 = vpack.c.b16 %v377, %v376
    %394 = vmatprep.subr.bf16.mxu0 0
    %395 = vmatpush1.bf16.msra.mxu0 %v378
    %396 = vmatprep.subr.bf16.mxu0 0
    %397 = vmatpush1.bf16.msra.mxu0 %v379
    %398 = vmatprep.subr.bf16.mxu0 0
    %399 = vmatpush1.bf16.msra.mxu0 %v380
    %400 = vmatprep.subr.bf16.mxu0 0
    %401 = vmatpush1.bf16.msra.mxu0 %v381
    %402 = vmatprep.subr.bf16.mxu0 0
    %403 = vmatpush1.bf16.msra.mxu0 %v382
    %404 = vmatprep.subr.bf16.mxu0 0
    %405 = vmatpush1.bf16.msra.mxu0 %v383
    %406 = vmatprep.subr.bf16.mxu0 0
    %407 = vmatpush1.bf16.msra.mxu0 %v384
    %408 = vmatprep.subr.bf16.mxu0 0
    %409 = vmatpush1.bf16.msra.mxu0 %v385
    %410 = vmatprep.subr.bf16.mxu0 0
    %411 = vmatpush1.bf16.msra.mxu0 0
    %412 = vmatprep.subr.bf16.mxu0 0
    %413 = vmatpush1.bf16.msra.mxu0 0
    %414 = vmatprep.subr.bf16.mxu0 0
    %415 = vmatpush1.bf16.msra.mxu0 0
    %416 = vmatprep.subr.bf16.mxu0 0
    %417 = vmatpush1.bf16.msra.mxu0 0
    %418 = vmatprep.subr.bf16.mxu0 0
    %419 = vmatpush1.bf16.msra.mxu0 0
    %420 = vmatprep.subr.bf16.mxu0 0
    %421 = vmatpush1.bf16.msra.mxu0 0
    %422 = vmatprep.subr.bf16.mxu0 0
    %423 = vmatpush1.bf16.msra.mxu0 0
    %424 = vmatprep.subr.bf16.mxu0 0
    %425 = vmatpush1.bf16.msra.mxu0 0
    %426 = vmatprep.mubr.bf16.mxu0 0
    %427 = vmatmul.mubr.bf16.gmra.mrb[0].mxu0 %v322
    %v428 = vpop.f32.mrb[0].mxu0
    %v429 = vadd.f32 %v344, %v428
    %v430 = vpop.f32.mrb[0].mxu0
    %v431 = vpop.f32.mrb[0].mxu0
    %v432 = vadd.f32 %v344, %v431
    %v433 = vpop.f32.mrb[0].mxu0
    %434 = vdwg.mxu0
    %435 = vst [vmem:[#allocation10] sm:$0xff] %v429
    %436 = vst [vmem:[#allocation10 + $0x8] sm:$0xff] %v432
    // Predicated region
    $region46: #{tpu_custom_call.1} parent=1 // pred_check
      _
    $region47: #{tpu_custom_call.1} parent=1 // pred_check_branch
      %438 = sbr.rel (0) target = $region49
    $region48: #{tpu_custom_call.1} parent=1 // pred_region
      %s440 = ssub.s32 256, 256
      %441 = vsyncadd [#allocation4], %s440
      %s442 = sshll.u32 [#allocation10], 4
      %s443 = int_to_ptr.vmem [resolvable:$true] %s442
      %448 = dma.vmem_to_hbm [thread:$0]  %s443, 256, %s7, [#allocation4], 128, 128, 8
    $region49: #{tpu_custom_call.1} parent=1 // pred_fallthru
      _
    // Predicated region
    $region50: #{tpu_custom_call.1} parent=1 // pred_check
      _
    $region51: #{tpu_custom_call.1} parent=1 // pred_check_branch
      %450 = sbr.rel (0) target = $region53
    $region52: #{tpu_custom_call.1} parent=1 // pred_region
      %451 = dma.done [#allocation4], 256
    $region53: #{tpu_custom_call.1} parent=1 // pred_fallthru
      _
    %452 = vsyncpa [#allocation3], 1
    %453 = vsyncpa [#allocation6], 1
    %454 = vsyncpa [#allocation9], 1
    %455 = vsyncpa [#allocation4], 1

</llo_original>
